<compile_context>
chip_gen: v6e
topology: v6e:2x2x1
jax: 0.10.0
libtpu: 0.0.40
codegen_flags: <defaults>
</compile_context>

<pallas_src>
import functools

import jax
import jax.numpy as jnp
from jax.experimental import pallas as pl
from jax.experimental.pallas import tpu as pltpu


def _round_up(x, m):
    return (x + m - 1) // m * m


def rnn_fc_kernel(x_ref, w_ih_ref, w_hh_ref, b_rnn_ref, w_fc_ref, b_fc_ref,
                  out_ref, *, num_subtiles):
    """Fused Elman-RNN recurrence + final Linear for one batch tile.

    Shapes (all padded, all VMEM):
      x_ref    : (TB, T)   batch-major input (input_size == 1 squeezed)
      w_ih_ref : (1, Hp)   W_ih^T, zero-padded, f32
      w_hh_ref : (Hp, Hp)  W_hh^T, zero-padded, pre-cast to the dot dtype
      b_rnn_ref: (1, Hp)   b_ih + b_hh, zero-padded, f32
      w_fc_ref : (Hp, Op)  W_fc^T, zero-padded, f32
      b_fc_ref : (1, Op)   b_fc, zero-padded, f32
      out_ref  : (TB, Op)  lane-dense padded output

    Padded-lane invariant: w_ih / b_rnn / w_hh pads are exactly zero, so the
    padded hidden lanes have zero pre-activation and tanh keeps them at 0;
    zero-padded w_fc rows then protect the real outputs.
    """
    TB, T = x_ref.shape
    SUB = TB // num_subtiles

    x_blk = x_ref[...]                                   # (TB, T) f32
    w_ih = w_ih_ref[...]                                 # (1, Hp) f32
    b_rnn = b_rnn_ref[...]                               # (1, Hp) f32
    w_hh = w_hh_ref[...]                                 # (Hp, Hp) dot dtype
    dot_dtype = w_hh.dtype

    def inp(s, t):
        # input_size == 1 -> x_t @ W_ih^T is a broadcasted scale.  Per-step
        # VPU work that hides under the serial MXU -> tanh chain.
        x_st = x_blk[s * SUB:(s + 1) * SUB, t:t + 1]     # (SUB, 1) static slice
        return x_st * w_ih + b_rnn                       # (SUB, Hp)

    # t = 0: h_prev == 0, so the matmul is skipped entirely (bit-exact).
    hs = [jnp.tanh(inp(s, 0)) for s in range(num_subtiles)]

    # Fully unrolled static recurrence.  The per-sub-tile chains are
    # independent within a time step, so the scheduler overlaps one chain's
    # tanh / cast with another chain's matmul.
    for t in range(1, T):
        for s in range(num_subtiles):
            pre = inp(s, t) + jnp.dot(hs[s].astype(dot_dtype), w_hh,
                                      preferred_element_type=jnp.float32)
            hs[s] = jnp.tanh(pre)                        # padded lanes stay 0

    # Final Linear (runs once), kept in f32.
    w_fc = w_fc_ref[...]                                 # (Hp, Op)
    b_fc = b_fc_ref[...]                                 # (1, Op)
    for s in range(num_subtiles):
        y = jnp.dot(hs[s], w_fc, preferred_element_type=jnp.float32) + b_fc
        out_ref[s * SUB:(s + 1) * SUB, :] = y.astype(out_ref.dtype)


def init_params(hidden=64, out_dim=5, input_size=1):
    """Deterministic init matching PyTorch's default U(-k, k) ranges."""
    key = jax.random.PRNGKey(0)
    k_rnn = 1.0 / jnp.sqrt(hidden)
    k_fc = 1.0 / jnp.sqrt(hidden)
    keys = jax.random.split(key, 6)
    w_ih = jax.random.uniform(keys[0], (hidden, input_size), jnp.float32,
                              -k_rnn, k_rnn)
    w_hh = jax.random.uniform(keys[1], (hidden, hidden), jnp.float32,
                              -k_rnn, k_rnn)
    b_ih = jax.random.uniform(keys[2], (hidden,), jnp.float32, -k_rnn, k_rnn)
    b_hh = jax.random.uniform(keys[3], (hidden,), jnp.float32, -k_rnn, k_rnn)
    w_fc = jax.random.uniform(keys[4], (out_dim, hidden), jnp.float32,
                              -k_fc, k_fc)
    b_fc = jax.random.uniform(keys[5], (out_dim,), jnp.float32, -k_fc, k_fc)
    return dict(w_ih=w_ih, w_hh=w_hh, b_ih=b_ih, b_hh=b_hh,
                w_fc=w_fc, b_fc=b_fc)


def make_rnn_forward(params, *, use_bf16_matmul=True, batch_tile=None):
    """One-time weight prep + jitted forward.

    Returns a jitted callable: x (B, T, 1) f32 -> (B, out_dim, 1) f32
    (PyTorch semantics: last-timestep hidden state through the Linear,
    unsqueezed on the last axis).

    use_bf16_matmul: store W_hh in bf16 and run the recurrent MXU dot with
    bf16 operands / f32 accumulation (faster on v6e/v7x; looser numerics).
    batch_tile: optional explicit batch tile (e.g. 512 for v5e sub-tile
    interleave across its 4 MXUs); default heuristic otherwise.
    """
    H = params["w_hh"].shape[0]
    O = params["w_fc"].shape[0]
    assert params["w_ih"].shape[1] == 1

    Hp = _round_up(H, 128)           # 64 -> 128 : full-lane vregs / MXU tiles
    Op = _round_up(O, 128)           # 5  -> 128 : lane-dense unmasked store
    dot_dtype = jnp.bfloat16 if use_bf16_matmul else jnp.float32

    # --- one-time weight padding / transpose / cast (exact zeros in pads) --
    w_ih_p = jnp.zeros((1, Hp), jnp.float32).at[:, :H].set(
        params["w_ih"].astype(jnp.float32).T)                      # (1, Hp)
    w_hh_p = jnp.zeros((Hp, Hp), jnp.float32).at[:H, :H].set(
        params["w_hh"].astype(jnp.float32).T).astype(dot_dtype)    # (Hp, Hp)
    b_rnn_p = jnp.zeros((1, Hp), jnp.float32).at[:, :H].set(
        (params["b_ih"] + params["b_hh"]).astype(jnp.float32)[None, :])
    w_fc_p = jnp.zeros((Hp, Op), jnp.float32).at[:H, :O].set(
        params["w_fc"].astype(jnp.float32).T)                      # (Hp, Op)
    b_fc_p = jnp.zeros((1, Op), jnp.float32).at[:, :O].set(
        params["b_fc"].astype(jnp.float32)[None, :])
    weight_bytes = int(w_ih_p.size * 4 + w_hh_p.size * w_hh_p.dtype.itemsize
                       + b_rnn_p.size * 4 + w_fc_p.size * 4 + b_fc_p.size * 4)

    @jax.jit
    def forward(x):
        B, T, I = x.shape
        assert I == 1

        # Batch tiling:
        #   * tiny B      : one tile == padded B
        #   * moderate B  : two tiles so ("parallel",) shards across both
        #                   v7x TensorCores
        #   * large B     : TB=256 = 2 x 128 interleaved sub-tiles per grid
        #                   step (fills the 256-wide MXU M, hides per-step
        #                   tanh/cast latency behind the other sub-tile)
        B8 = _round_up(B, 8)
        if batch_tile is not None:
            TB = batch_tile
        elif B8 <= 16:
            TB = B8
        elif B8 <= 256:
            TB = _round_up((B8 + 1) // 2, 8)
        elif B8 <= 1024:
            TB = 128
        else:
            TB = 256
        B_pad = _round_up(B8, TB)
        grid = (B_pad // TB,)
        num_subtiles = TB // 128 if (TB % 128 == 0 and TB > 128) else 1

        # Per-call input prep: only the x squeeze + pad (batch-major).
        x_bt = jnp.zeros((B_pad, T), jnp.float32).at[:B, :].set(
            x[..., 0].astype(jnp.float32))

        kernel = functools.partial(rnn_fc_kernel, num_subtiles=num_subtiles)

        cost = pl.CostEstimate(
            flops=2 * B_pad * (T - 1) * Hp * Hp
                  + 2 * B_pad * T * Hp
                  + 2 * B_pad * Hp * Op,
            transcendentals=B_pad * T * Hp,
            bytes_accessed=x_bt.size * 4 + grid[0] * weight_bytes
                           + B_pad * Op * 4,
        )

        const_map = lambda i: (0, 0)
        y_pad = pl.pallas_call(
            kernel,
            out_shape=jax.ShapeDtypeStruct((B_pad, Op), jnp.float32),
            grid=grid,
            in_specs=[
                pl.BlockSpec((TB, T), lambda i: (i, 0)),   # x, batch-tiled
                pl.BlockSpec((1, Hp), const_map),          # w_ih^T
                pl.BlockSpec((Hp, Hp), const_map),         # w_hh^T (pre-cast)
                pl.BlockSpec((1, Hp), const_map),          # b_ih + b_hh
                pl.BlockSpec((Hp, Op), const_map),         # w_fc^T
                pl.BlockSpec((1, Op), const_map),          # b_fc
            ],
            out_specs=pl.BlockSpec((TB, Op), lambda i: (i, 0)),
            compiler_params=pltpu.CompilerParams(
                dimension_semantics=("parallel",),
                vmem_limit_bytes=32 * 1024 * 1024,
            ),
            cost_estimate=cost,
        )(x_bt, w_ih_p, w_hh_p, b_rnn_p, w_fc_p, b_fc_p)

        return y_pad[:B, :O][:, :, None]                   # (B, out_dim, 1)

    return forward


def rnn_forward_ref(x, params):
    """Pure-JAX reference matching torch.nn.RNN + Linear."""
    B, T, _ = x.shape
    H = params["w_hh"].shape[0]
    h = jnp.zeros((B, H), jnp.float32)
    for t in range(T):
        pre = (x[:, t, :] @ params["w_ih"].T + params["b_ih"]
               + h @ params["w_hh"].T + params["b_hh"])
        h = jnp.tanh(pre)
    y = h @ params["w_fc"].T + params["b_fc"]
    return y[:, :, None]


if __name__ == "__main__":
    B, T = 2, 8
    params = init_params(hidden=64, out_dim=5, input_size=1)
    x = jax.random.normal(jax.random.PRNGKey(0), (B, T, 1), dtype=jnp.float32)

    ref = rnn_forward_ref(x, params)

    # Exact-precision path (f32 MXU operands): tight tolerance.
    forward_f32 = make_rnn_forward(params, use_bf16_matmul=False)
    out_f32 = jax.block_until_ready(forward_f32(x))
    assert out_f32.shape == (B, 5, 1)
    assert jnp.allclose(out_f32, ref, atol=1e-5, rtol=1e-5)

    # Fast path (bf16 MXU operands, f32 accumulation): looser tolerance.
    forward_bf16 = make_rnn_forward(params, use_bf16_matmul=True)
    out_bf16 = jax.block_until_ready(forward_bf16(x))
    assert out_bf16.shape == (B, 5, 1)
    assert jnp.allclose(out_bf16, ref, atol=3e-2, rtol=3e-2)

    print("KERNEL_OK")
</pallas_src>

<mosaic_0001>
module attributes {stable_mosaic.version = 11 : i64} {
  func.func @rnn_fc_kernel(%arg0: i32, %arg1: memref<8x8xf32, #tpu.memory_space<vmem>>, %arg2: memref<1x128xf32, #tpu.memory_space<vmem>>, %arg3: memref<128x128xf32, #tpu.memory_space<vmem>>, %arg4: memref<1x128xf32, #tpu.memory_space<vmem>>, %arg5: memref<128x128xf32, #tpu.memory_space<vmem>>, %arg6: memref<1x128xf32, #tpu.memory_space<vmem>>, %arg7: memref<8x128xf32, #tpu.memory_space<vmem>>) attributes {dimension_semantics = [#tpu.dimension_semantics<parallel>], iteration_bounds = array<i64: 1>, scalar_prefetch = 0 : i64, scratch_operands = 0 : i64, tpu.core_type = #tpu.core_type<tc>, window_params = [{transform_indices = @transform_0, window_bounds = array<i64: 8, 8>}, {pipeline_mode = #tpu.pipeline_mode<synchronous>, transform_indices = @transform_1, window_bounds = array<i64: 1, 128>}, {pipeline_mode = #tpu.pipeline_mode<synchronous>, transform_indices = @transform_2, window_bounds = array<i64: 128, 128>}, {pipeline_mode = #tpu.pipeline_mode<synchronous>, transform_indices = @transform_3, window_bounds = array<i64: 1, 128>}, {pipeline_mode = #tpu.pipeline_mode<synchronous>, transform_indices = @transform_4, window_bounds = array<i64: 128, 128>}, {pipeline_mode = #tpu.pipeline_mode<synchronous>, transform_indices = @transform_5, window_bounds = array<i64: 1, 128>}, {transform_indices = @transform_6, window_bounds = array<i64: 8, 128>}]} {
    %c0 = arith.constant 0 : index
    %c0_0 = arith.constant 0 : index
    %0 = vector.load %arg1[%c0, %c0_0] : memref<8x8xf32, #tpu.memory_space<vmem>>, vector<8x8xf32>
    %c0_1 = arith.constant 0 : index
    %c0_2 = arith.constant 0 : index
    %1 = vector.load %arg2[%c0_1, %c0_2] : memref<1x128xf32, #tpu.memory_space<vmem>>, vector<1x128xf32>
    %c0_3 = arith.constant 0 : index
    %c0_4 = arith.constant 0 : index
    %2 = vector.load %arg4[%c0_3, %c0_4] : memref<1x128xf32, #tpu.memory_space<vmem>>, vector<1x128xf32>
    %c0_5 = arith.constant 0 : index
    %c0_6 = arith.constant 0 : index
    %3 = vector.load %arg3[%c0_5, %c0_6] : memref<128x128xf32, #tpu.memory_space<vmem>>, vector<128x128xf32>
    %4 = vector.extract_strided_slice %0 {offsets = [0, 0], sizes = [8, 1], strides = [1, 1]} : vector<8x8xf32> to vector<8x1xf32>
    %5 = vector.broadcast %4 : vector<8x1xf32> to vector<8x128xf32>
    %6 = vector.broadcast %1 : vector<1x128xf32> to vector<8x128xf32>
    %7 = arith.mulf %5, %6 : vector<8x128xf32>
    %8 = vector.broadcast %2 : vector<1x128xf32> to vector<8x128xf32>
    %9 = arith.addf %7, %8 : vector<8x128xf32>
    %10 = math.tanh %9 : vector<8x128xf32>
    %11 = vector.extract_strided_slice %0 {offsets = [0, 1], sizes = [8, 1], strides = [1, 1]} : vector<8x8xf32> to vector<8x1xf32>
    %12 = vector.broadcast %11 : vector<8x1xf32> to vector<8x128xf32>
    %13 = vector.broadcast %1 : vector<1x128xf32> to vector<8x128xf32>
    %14 = arith.mulf %12, %13 : vector<8x128xf32>
    %15 = vector.broadcast %2 : vector<1x128xf32> to vector<8x128xf32>
    %16 = arith.addf %14, %15 : vector<8x128xf32>
    %cst = arith.constant dense<0.000000e+00> : vector<8x128xf32>
    %17 = tpu.matmul %10, %3, %cst {dimension_numbers = #tpu.dot_dimension_numbers<[1], [0], [0], [1], [0, 0, 1, 1], [], []>} : vector<8x128xf32>, vector<128x128xf32>, vector<8x128xf32> -> vector<8x128xf32>
    %18 = arith.addf %16, %17 : vector<8x128xf32>
    %19 = math.tanh %18 : vector<8x128xf32>
    %20 = vector.extract_strided_slice %0 {offsets = [0, 2], sizes = [8, 1], strides = [1, 1]} : vector<8x8xf32> to vector<8x1xf32>
    %21 = vector.broadcast %20 : vector<8x1xf32> to vector<8x128xf32>
    %22 = vector.broadcast %1 : vector<1x128xf32> to vector<8x128xf32>
    %23 = arith.mulf %21, %22 : vector<8x128xf32>
    %24 = vector.broadcast %2 : vector<1x128xf32> to vector<8x128xf32>
    %25 = arith.addf %23, %24 : vector<8x128xf32>
    %cst_7 = arith.constant dense<0.000000e+00> : vector<8x128xf32>
    %26 = tpu.matmul %19, %3, %cst_7 {dimension_numbers = #tpu.dot_dimension_numbers<[1], [0], [0], [1], [0, 0, 1, 1], [], []>} : vector<8x128xf32>, vector<128x128xf32>, vector<8x128xf32> -> vector<8x128xf32>
    %27 = arith.addf %25, %26 : vector<8x128xf32>
    %28 = math.tanh %27 : vector<8x128xf32>
    %29 = vector.extract_strided_slice %0 {offsets = [0, 3], sizes = [8, 1], strides = [1, 1]} : vector<8x8xf32> to vector<8x1xf32>
    %30 = vector.broadcast %29 : vector<8x1xf32> to vector<8x128xf32>
    %31 = vector.broadcast %1 : vector<1x128xf32> to vector<8x128xf32>
    %32 = arith.mulf %30, %31 : vector<8x128xf32>
    %33 = vector.broadcast %2 : vector<1x128xf32> to vector<8x128xf32>
    %34 = arith.addf %32, %33 : vector<8x128xf32>
    %cst_8 = arith.constant dense<0.000000e+00> : vector<8x128xf32>
    %35 = tpu.matmul %28, %3, %cst_8 {dimension_numbers = #tpu.dot_dimension_numbers<[1], [0], [0], [1], [0, 0, 1, 1], [], []>} : vector<8x128xf32>, vector<128x128xf32>, vector<8x128xf32> -> vector<8x128xf32>
    %36 = arith.addf %34, %35 : vector<8x128xf32>
    %37 = math.tanh %36 : vector<8x128xf32>
    %38 = vector.extract_strided_slice %0 {offsets = [0, 4], sizes = [8, 1], strides = [1, 1]} : vector<8x8xf32> to vector<8x1xf32>
    %39 = vector.broadcast %38 : vector<8x1xf32> to vector<8x128xf32>
    %40 = vector.broadcast %1 : vector<1x128xf32> to vector<8x128xf32>
    %41 = arith.mulf %39, %40 : vector<8x128xf32>
    %42 = vector.broadcast %2 : vector<1x128xf32> to vector<8x128xf32>
    %43 = arith.addf %41, %42 : vector<8x128xf32>
    %cst_9 = arith.constant dense<0.000000e+00> : vector<8x128xf32>
    %44 = tpu.matmul %37, %3, %cst_9 {dimension_numbers = #tpu.dot_dimension_numbers<[1], [0], [0], [1], [0, 0, 1, 1], [], []>} : vector<8x128xf32>, vector<128x128xf32>, vector<8x128xf32> -> vector<8x128xf32>
    %45 = arith.addf %43, %44 : vector<8x128xf32>
    %46 = math.tanh %45 : vector<8x128xf32>
    %47 = vector.extract_strided_slice %0 {offsets = [0, 5], sizes = [8, 1], strides = [1, 1]} : vector<8x8xf32> to vector<8x1xf32>
    %48 = vector.broadcast %47 : vector<8x1xf32> to vector<8x128xf32>
    %49 = vector.broadcast %1 : vector<1x128xf32> to vector<8x128xf32>
    %50 = arith.mulf %48, %49 : vector<8x128xf32>
    %51 = vector.broadcast %2 : vector<1x128xf32> to vector<8x128xf32>
    %52 = arith.addf %50, %51 : vector<8x128xf32>
    %cst_10 = arith.constant dense<0.000000e+00> : vector<8x128xf32>
    %53 = tpu.matmul %46, %3, %cst_10 {dimension_numbers = #tpu.dot_dimension_numbers<[1], [0], [0], [1], [0, 0, 1, 1], [], []>} : vector<8x128xf32>, vector<128x128xf32>, vector<8x128xf32> -> vector<8x128xf32>
    %54 = arith.addf %52, %53 : vector<8x128xf32>
    %55 = math.tanh %54 : vector<8x128xf32>
    %56 = vector.extract_strided_slice %0 {offsets = [0, 6], sizes = [8, 1], strides = [1, 1]} : vector<8x8xf32> to vector<8x1xf32>
    %57 = vector.broadcast %56 : vector<8x1xf32> to vector<8x128xf32>
    %58 = vector.broadcast %1 : vector<1x128xf32> to vector<8x128xf32>
    %59 = arith.mulf %57, %58 : vector<8x128xf32>
    %60 = vector.broadcast %2 : vector<1x128xf32> to vector<8x128xf32>
    %61 = arith.addf %59, %60 : vector<8x128xf32>
    %cst_11 = arith.constant dense<0.000000e+00> : vector<8x128xf32>
    %62 = tpu.matmul %55, %3, %cst_11 {dimension_numbers = #tpu.dot_dimension_numbers<[1], [0], [0], [1], [0, 0, 1, 1], [], []>} : vector<8x128xf32>, vector<128x128xf32>, vector<8x128xf32> -> vector<8x128xf32>
    %63 = arith.addf %61, %62 : vector<8x128xf32>
    %64 = math.tanh %63 : vector<8x128xf32>
    %65 = vector.extract_strided_slice %0 {offsets = [0, 7], sizes = [8, 1], strides = [1, 1]} : vector<8x8xf32> to vector<8x1xf32>
    %66 = vector.broadcast %65 : vector<8x1xf32> to vector<8x128xf32>
    %67 = vector.broadcast %1 : vector<1x128xf32> to vector<8x128xf32>
    %68 = arith.mulf %66, %67 : vector<8x128xf32>
    %69 = vector.broadcast %2 : vector<1x128xf32> to vector<8x128xf32>
    %70 = arith.addf %68, %69 : vector<8x128xf32>
    %cst_12 = arith.constant dense<0.000000e+00> : vector<8x128xf32>
    %71 = tpu.matmul %64, %3, %cst_12 {dimension_numbers = #tpu.dot_dimension_numbers<[1], [0], [0], [1], [0, 0, 1, 1], [], []>} : vector<8x128xf32>, vector<128x128xf32>, vector<8x128xf32> -> vector<8x128xf32>
    %72 = arith.addf %70, %71 : vector<8x128xf32>
    %73 = math.tanh %72 : vector<8x128xf32>
    %c0_13 = arith.constant 0 : index
    %c0_14 = arith.constant 0 : index
    %74 = vector.load %arg5[%c0_13, %c0_14] : memref<128x128xf32, #tpu.memory_space<vmem>>, vector<128x128xf32>
    %c0_15 = arith.constant 0 : index
    %c0_16 = arith.constant 0 : index
    %75 = vector.load %arg6[%c0_15, %c0_16] : memref<1x128xf32, #tpu.memory_space<vmem>>, vector<1x128xf32>
    %cst_17 = arith.constant dense<0.000000e+00> : vector<8x128xf32>
    %76 = tpu.matmul %73, %74, %cst_17 {dimension_numbers = #tpu.dot_dimension_numbers<[1], [0], [0], [1], [0, 0, 1, 1], [], []>} : vector<8x128xf32>, vector<128x128xf32>, vector<8x128xf32> -> vector<8x128xf32>
    %77 = vector.broadcast %75 : vector<1x128xf32> to vector<8x128xf32>
    %78 = arith.addf %76, %77 : vector<8x128xf32>
    %c0_18 = arith.constant 0 : index
    %c0_19 = arith.constant 0 : index
    %79 = vector.load %arg7[%c0_18, %c0_19] : memref<8x128xf32, #tpu.memory_space<vmem>>, vector<8x128xf32>
    tpu.vector_store %arg7[%c0_18, %c0_19], %78 {strides = array<i32>} : memref<8x128xf32, #tpu.memory_space<vmem>>, vector<8x128xf32>,
    return
  }
  func.func @transform_0(%arg0: i32) -> (i32, i32) {
    %c0_i32 = arith.constant 0 : i32
    %c0_i32_0 = arith.constant 0 : i32
    return %arg0, %c0_i32 : i32, i32
  }
  func.func @transform_1(%arg0: i32) -> (i32, i32) {
    %c0_i32 = arith.constant 0 : i32
    %c0_i32_0 = arith.constant 0 : i32
    %c0_i32_1 = arith.constant 0 : i32
    return %c0_i32, %c0_i32_0 : i32, i32
  }
  func.func @transform_2(%arg0: i32) -> (i32, i32) {
    %c0_i32 = arith.constant 0 : i32
    %c0_i32_0 = arith.constant 0 : i32
    %c0_i32_1 = arith.constant 0 : i32
    return %c0_i32, %c0_i32_0 : i32, i32
  }
  func.func @transform_3(%arg0: i32) -> (i32, i32) {
    %c0_i32 = arith.constant 0 : i32
    %c0_i32_0 = arith.constant 0 : i32
    %c0_i32_1 = arith.constant 0 : i32
    return %c0_i32, %c0_i32_0 : i32, i32
  }
  func.func @transform_4(%arg0: i32) -> (i32, i32) {
    %c0_i32 = arith.constant 0 : i32
    %c0_i32_0 = arith.constant 0 : i32
    %c0_i32_1 = arith.constant 0 : i32
    return %c0_i32, %c0_i32_0 : i32, i32
  }
  func.func @transform_5(%arg0: i32) -> (i32, i32) {
    %c0_i32 = arith.constant 0 : i32
    %c0_i32_0 = arith.constant 0 : i32
    %c0_i32_1 = arith.constant 0 : i32
    return %c0_i32, %c0_i32_0 : i32, i32
  }
  func.func @transform_6(%arg0: i32) -> (i32, i32) {
    %c0_i32 = arith.constant 0 : i32
    %c0_i32_0 = arith.constant 0 : i32
    return %arg0, %c0_i32 : i32, i32
  }
}

</mosaic_0001>

<llo_original>
// kernel: forward.1
$region0: #{forward.1}
  #allocation0 [shape = 'u32[]', space=smem, size = 0x4, offset = 0x4, fixed_abs, tag = 'smem constant byte address 0x4 - core index']
  #allocation1 [shape = 'u32[144,128]{1,0:T(1,128)}', space=vmem, size = 0x12000, scoped, tag = 'internal scratch']
  %s0 = inlined_call_operand.vmem [shape: f32[8,8], index: 0, kind: input, shape index: {}]
  %s1 = inlined_call_operand.vmem [shape: f32[1,128], index: 1, kind: input, shape index: {}]
  %s2 = inlined_call_operand.hbm [shape: f32[128,128], index: 2, kind: input, shape index: {}]
  %s3 = inlined_call_operand.vmem [shape: f32[1,128], index: 3, kind: input, shape index: {}]
  %s4 = inlined_call_operand.hbm [shape: f32[128,128], index: 4, kind: input, shape index: {}]
  %s5 = inlined_call_operand.vmem [shape: f32[1,128], index: 5, kind: input, shape index: {}]
  %s6 = inlined_call_operand.vmem [shape: f32[8,128], index: 6, kind: output, shape index: {}]
  %s7 = sld [smem:[#allocation0]]
  $region42: #{forward.1} parent=0
    _
  %s9 = ssub.s32 1, %s7
  %s10 = scalar_select 0, %s9, %s7
  $region1: #{forward.1} parent=0
    #allocation2 [shape = 'u8[65536]{0}', space=vmem, size = 0x10000, scoped, tag = 'input window, operand 2, single buffered']
    #allocation3 [shape = 's32[1]{0}', space=sflag, size = 0x4, scoped, tag = 'scoped memory for forward.1']
    #allocation4 [shape = 'u8[65536]{0}', space=vmem, size = 0x10000, scoped, tag = 'input window, operand 4, single buffered']
    #allocation5 [shape = 's32[1]{0}', space=sflag, size = 0x4, scoped, tag = 'scoped memory for forward.1']
    %11 = vsyncpa [#allocation3], 0
    %12 = vsyncpa [#allocation5], 0
    // Predicated region
    $region2: #{forward.1} parent=1 // pred_check
      _
    $region3: #{forward.1} parent=1 // pred_check_branch
      %14 = sbr.rel (0) target = $region5
    $region4: #{forward.1} parent=1 // pred_region
      _
    $region5: #{forward.1} parent=1 // pred_fallthru
      _
    // Predicated region
    $region6: #{forward.1} parent=1 // pred_check
      _
    $region7: #{forward.1} parent=1 // pred_check_branch
      %16 = sbr.rel (0) target = $region9
    $region8: #{forward.1} parent=1 // pred_region
      _
    $region9: #{forward.1} parent=1 // pred_fallthru
      _
    // Predicated region
    $region10: #{forward.1} parent=1 // pred_check
      _
    $region11: #{forward.1} parent=1 // pred_check_branch
      %18 = sbr.rel (0) target = $region13
    $region12: #{forward.1} parent=1 // pred_region
      %s20 = ssub.s32 2048, 2048
      %21 = vsyncadd [#allocation3], %s20
      %s22 = sshll.u32 [#allocation2], 4
      %s23 = int_to_ptr.vmem [resolvable:$true] %s22
      %28 = dma.hbm_to_vmem [thread:$0]  %s2, 2048, %s23, [#allocation3], 128, 128, 8
    $region13: #{forward.1} parent=1 // pred_fallthru
      _
    // Predicated region
    $region14: #{forward.1} parent=1 // pred_check
      _
    $region15: #{forward.1} parent=1 // pred_check_branch
      %30 = sbr.rel (0) target = $region17
    $region16: #{forward.1} parent=1 // pred_region
      _
    $region17: #{forward.1} parent=1 // pred_fallthru
      _
    // Predicated region
    $region18: #{forward.1} parent=1 // pred_check
      _
    $region19: #{forward.1} parent=1 // pred_check_branch
      %32 = sbr.rel (0) target = $region21
    $region20: #{forward.1} parent=1 // pred_region
      %s34 = ssub.s32 2048, 2048
      %35 = vsyncadd [#allocation5], %s34
      %s36 = sshll.u32 [#allocation4], 4
      %s37 = int_to_ptr.vmem [resolvable:$true] %s36
      %42 = dma.hbm_to_vmem [thread:$0]  %s4, 2048, %s37, [#allocation5], 128, 128, 8
    $region21: #{forward.1} parent=1 // pred_fallthru
      _
    // Predicated region
    $region22: #{forward.1} parent=1 // pred_check
      _
    $region23: #{forward.1} parent=1 // pred_check_branch
      %44 = sbr.rel (0) target = $region25
    $region24: #{forward.1} parent=1 // pred_region
      _
    $region25: #{forward.1} parent=1 // pred_fallthru
      _
    // Predicated region
    $region26: #{forward.1} parent=1 // pred_check
      _
    $region27: #{forward.1} parent=1 // pred_check_branch
      %46 = sbr.rel (0) target = $region29
    $region28: #{forward.1} parent=1 // pred_region
      %47 = dma.done [#allocation3], 2048
    $region29: #{forward.1} parent=1 // pred_fallthru
      _
    // Predicated region
    $region30: #{forward.1} parent=1 // pred_check
      _
    $region31: #{forward.1} parent=1 // pred_check_branch
      %49 = sbr.rel (0) target = $region33
    $region32: #{forward.1} parent=1 // pred_region
      %50 = dma.done [#allocation5], 2048
    $region33: #{forward.1} parent=1 // pred_fallthru
      _
    %v51 = vld [vmem:[%s0] sm:$0xff]
    %v52 = vld [vmem:[%s1] sm:$0x1]
    %v53 = vld [vmem:[%s3] sm:$0x1]
    %v54 = vld [vmem:[#allocation2] sm:$0xff]
    %v55 = vld [vmem:[#allocation2 + $0x8] sm:$0xff]
    %v56 = vld [vmem:[#allocation2 + $0x10] sm:$0xff]
    %v57 = vld [vmem:[#allocation2 + $0x18] sm:$0xff]
    %v58 = vld [vmem:[#allocation2 + $0x20] sm:$0xff]
    %v59 = vld [vmem:[#allocation2 + $0x28] sm:$0xff]
    %v60 = vld [vmem:[#allocation2 + $0x30] sm:$0xff]
    %v61 = vld [vmem:[#allocation2 + $0x38] sm:$0xff]
    %v62 = vld [vmem:[#allocation2 + $0x40] sm:$0xff]
    %v63 = vld [vmem:[#allocation2 + $0x48] sm:$0xff]
    %v64 = vld [vmem:[#allocation2 + $0x50] sm:$0xff]
    %v65 = vld [vmem:[#allocation2 + $0x58] sm:$0xff]
    %v66 = vld [vmem:[#allocation2 + $0x60] sm:$0xff]
    %v67 = vld [vmem:[#allocation2 + $0x68] sm:$0xff]
    %v68 = vld [vmem:[#allocation2 + $0x70] sm:$0xff]
    %v69 = vld [vmem:[#allocation2 + $0x78] sm:$0xff]
    %71 = vset.pattern.permute.xlu0 0
    %72 = vperm.xlu0 %71, %v51
    %v73 = vpop.permute.xlu0 %72
    %v76 = vlaneseq
    %v77 = vshrl.u32 %v76, 7
    %v78 = vsub.s32 0, %v77
    %v79 = vrot.slane %v52, %v78
    %v81 = vmul.f32 %v73, %v79
    %v83 = vlaneseq
    %v84 = vshrl.u32 %v83, 7
    %v85 = vsub.s32 0, %v84
    %v86 = vrot.slane %v53, %v85
    %v88 = vadd.f32 %v81, %v86
    %v89 = vtanh.pop %v88
    %90 = vset.pattern.permute.xlu0 1
    %91 = vperm.xlu0 %90, %v51
    %v92 = vpop.permute.xlu0 %91
    %v94 = vmul.f32 %v92, %v79
    %v95 = vadd.f32 %v94, %v86
    %96 = vmatprep.subr.mxu0 0.0
    %97 = vmatpush1.msra.mxu0 %v69
    %98 = vmatprep.subr.mxu0 0.0
    %99 = vmatpush1.msra.mxu0 %v68
    %100 = vmatprep.subr.mxu0 0.0
    %101 = vmatpush1.msra.mxu0 %v67
    %102 = vmatprep.subr.mxu0 0.0
    %103 = vmatpush1.msra.mxu0 %v66
    %104 = vmatprep.subr.mxu0 0.0
    %105 = vmatpush1.msra.mxu0 %v65
    %106 = vmatprep.subr.mxu0 0.0
    %107 = vmatpush1.msra.mxu0 %v64
    %108 = vmatprep.subr.mxu0 0.0
    %109 = vmatpush1.msra.mxu0 %v63
    %110 = vmatprep.subr.mxu0 0.0
    %111 = vmatpush1.msra.mxu0 %v62
    %112 = vmatprep.subr.mxu0 0.0
    %113 = vmatpush1.msra.mxu0 %v61
    %114 = vmatprep.subr.mxu0 0.0
    %115 = vmatpush1.msra.mxu0 %v60
    %116 = vmatprep.subr.mxu0 0.0
    %117 = vmatpush1.msra.mxu0 %v59
    %118 = vmatprep.subr.mxu0 0.0
    %119 = vmatpush1.msra.mxu0 %v58
    %120 = vmatprep.subr.mxu0 0.0
    %121 = vmatpush1.msra.mxu0 %v57
    %122 = vmatprep.subr.mxu0 0.0
    %123 = vmatpush1.msra.mxu0 %v56
    %124 = vmatprep.subr.mxu0 0.0
    %125 = vmatpush1.msra.mxu0 %v55
    %126 = vmatprep.subr.mxu0 0.0
    %127 = vmatpush1.msra.mxu0 %v54
    %128 = vmatprep.subr.mxu0 0.0
    %129 = vmatpush2.msra.mxu0 0.0
    %130 = vmatprep.subr.mxu0 0.0
    %131 = vmatpush2.msra.mxu0 0.0
    %132 = vmatprep.subr.mxu0 0.0
    %133 = vmatpush2.msra.mxu0 0.0
    %134 = vmatprep.subr.mxu0 0.0
    %135 = vmatpush2.msra.mxu0 0.0
    %136 = vmatprep.subr.mxu0 0.0
    %137 = vmatpush2.msra.mxu0 0.0
    %138 = vmatprep.subr.mxu0 0.0
    %139 = vmatpush2.msra.mxu0 0.0
    %140 = vmatprep.subr.mxu0 0.0
    %141 = vmatpush2.msra.mxu0 0.0
    %142 = vmatprep.subr.mxu0 0.0
    %143 = vmatpush2.msra.mxu0 0.0
    %144 = vmatprep.subr.mxu0 0.0
    %145 = vmatpush2.msra.mxu0 0.0
    %146 = vmatprep.subr.mxu0 0.0
    %147 = vmatpush2.msra.mxu0 0.0
    %148 = vmatprep.subr.mxu0 0.0
    %149 = vmatpush2.msra.mxu0 0.0
    %150 = vmatprep.subr.mxu0 0.0
    %151 = vmatpush2.msra.mxu0 0.0
    %152 = vmatprep.subr.mxu0 0.0
    %153 = vmatpush2.msra.mxu0 0.0
    %154 = vmatprep.subr.mxu0 0.0
    %155 = vmatpush2.msra.mxu0 0.0
    %156 = vmatprep.subr.mxu0 0.0
    %157 = vmatpush2.msra.mxu0 0.0
    %158 = vmatprep.subr.mxu0 0.0
    %159 = vmatpush2.msra.mxu0 0.0
    %160 = vmatprep.mubr.f32.mxu0 0.0
    %161 = vmatmul.mubr.f32.gmra.mxu0 %v89
    %v162 = vpop.f32.mrf.mxu0
    %v163 = vadd.f32 0.0, %v162
    %v164 = vpop.f32.mrf.mxu0
    %165 = vdwg.mxu0
    %v166 = vadd.f32 %v95, %v163
    %v167 = vtanh.pop %v166
    %168 = vset.pattern.permute.xlu0 2
    %169 = vperm.xlu0 %168, %v51
    %v170 = vpop.permute.xlu0 %169
    %v172 = vmul.f32 %v170, %v79
    %v173 = vadd.f32 %v172, %v86
    %174 = vmatprep.subr.mxu0 0.0
    %175 = vmatpush1.msra.mxu0 %v69
    %176 = vmatprep.subr.mxu0 0.0
    %177 = vmatpush1.msra.mxu0 %v68
    %178 = vmatprep.subr.mxu0 0.0
    %179 = vmatpush1.msra.mxu0 %v67
    %180 = vmatprep.subr.mxu0 0.0
    %181 = vmatpush1.msra.mxu0 %v66
    %182 = vmatprep.subr.mxu0 0.0
    %183 = vmatpush1.msra.mxu0 %v65
    %184 = vmatprep.subr.mxu0 0.0
    %185 = vmatpush1.msra.mxu0 %v64
    %186 = vmatprep.subr.mxu0 0.0
    %187 = vmatpush1.msra.mxu0 %v63
    %188 = vmatprep.subr.mxu0 0.0
    %189 = vmatpush1.msra.mxu0 %v62
    %190 = vmatprep.subr.mxu0 0.0
    %191 = vmatpush1.msra.mxu0 %v61
    %192 = vmatprep.subr.mxu0 0.0
    %193 = vmatpush1.msra.mxu0 %v60
    %194 = vmatprep.subr.mxu0 0.0
    %195 = vmatpush1.msra.mxu0 %v59
    %196 = vmatprep.subr.mxu0 0.0
    %197 = vmatpush1.msra.mxu0 %v58
    %198 = vmatprep.subr.mxu0 0.0
    %199 = vmatpush1.msra.mxu0 %v57
    %200 = vmatprep.subr.mxu0 0.0
    %201 = vmatpush1.msra.mxu0 %v56
    %202 = vmatprep.subr.mxu0 0.0
    %203 = vmatpush1.msra.mxu0 %v55
    %204 = vmatprep.subr.mxu0 0.0
    %205 = vmatpush1.msra.mxu0 %v54
    %206 = vmatprep.subr.mxu0 0.0
    %207 = vmatpush2.msra.mxu0 0.0
    %208 = vmatprep.subr.mxu0 0.0
    %209 = vmatpush2.msra.mxu0 0.0
    %210 = vmatprep.subr.mxu0 0.0
    %211 = vmatpush2.msra.mxu0 0.0
    %212 = vmatprep.subr.mxu0 0.0
    %213 = vmatpush2.msra.mxu0 0.0
    %214 = vmatprep.subr.mxu0 0.0
    %215 = vmatpush2.msra.mxu0 0.0
    %216 = vmatprep.subr.mxu0 0.0
    %217 = vmatpush2.msra.mxu0 0.0
    %218 = vmatprep.subr.mxu0 0.0
    %219 = vmatpush2.msra.mxu0 0.0
    %220 = vmatprep.subr.mxu0 0.0
    %221 = vmatpush2.msra.mxu0 0.0
    %222 = vmatprep.subr.mxu0 0.0
    %223 = vmatpush2.msra.mxu0 0.0
    %224 = vmatprep.subr.mxu0 0.0
    %225 = vmatpush2.msra.mxu0 0.0
    %226 = vmatprep.subr.mxu0 0.0
    %227 = vmatpush2.msra.mxu0 0.0
    %228 = vmatprep.subr.mxu0 0.0
    %229 = vmatpush2.msra.mxu0 0.0
    %230 = vmatprep.subr.mxu0 0.0
    %231 = vmatpush2.msra.mxu0 0.0
    %232 = vmatprep.subr.mxu0 0.0
    %233 = vmatpush2.msra.mxu0 0.0
    %234 = vmatprep.subr.mxu0 0.0
    %235 = vmatpush2.msra.mxu0 0.0
    %236 = vmatprep.subr.mxu0 0.0
    %237 = vmatpush2.msra.mxu0 0.0
    %238 = vmatprep.mubr.f32.mxu0 0.0
    %239 = vmatmul.mubr.f32.gmra.mxu0 %v167
    %v240 = vpop.f32.mrf.mxu0
    %v241 = vadd.f32 0.0, %v240
    %v242 = vpop.f32.mrf.mxu0
    %243 = vdwg.mxu0
    %v244 = vadd.f32 %v173, %v241
    %v245 = vtanh.pop %v244
    %246 = vset.pattern.permute.xlu0 3
    %247 = vperm.xlu0 %246, %v51
    %v248 = vpop.permute.xlu0 %247
    %v250 = vmul.f32 %v248, %v79
    %v251 = vadd.f32 %v250, %v86
    %252 = vmatprep.subr.mxu0 0.0
    %253 = vmatpush1.msra.mxu0 %v69
    %254 = vmatprep.subr.mxu0 0.0
    %255 = vmatpush1.msra.mxu0 %v68
    %256 = vmatprep.subr.mxu0 0.0
    %257 = vmatpush1.msra.mxu0 %v67
    %258 = vmatprep.subr.mxu0 0.0
    %259 = vmatpush1.msra.mxu0 %v66
    %260 = vmatprep.subr.mxu0 0.0
    %261 = vmatpush1.msra.mxu0 %v65
    %262 = vmatprep.subr.mxu0 0.0
    %263 = vmatpush1.msra.mxu0 %v64
    %264 = vmatprep.subr.mxu0 0.0
    %265 = vmatpush1.msra.mxu0 %v63
    %266 = vmatprep.subr.mxu0 0.0
    %267 = vmatpush1.msra.mxu0 %v62
    %268 = vmatprep.subr.mxu0 0.0
    %269 = vmatpush1.msra.mxu0 %v61
    %270 = vmatprep.subr.mxu0 0.0
    %271 = vmatpush1.msra.mxu0 %v60
    %272 = vmatprep.subr.mxu0 0.0
    %273 = vmatpush1.msra.mxu0 %v59
    %274 = vmatprep.subr.mxu0 0.0
    %275 = vmatpush1.msra.mxu0 %v58
    %276 = vmatprep.subr.mxu0 0.0
    %277 = vmatpush1.msra.mxu0 %v57
    %278 = vmatprep.subr.mxu0 0.0
    %279 = vmatpush1.msra.mxu0 %v56
    %280 = vmatprep.subr.mxu0 0.0
    %281 = vmatpush1.msra.mxu0 %v55
    %282 = vmatprep.subr.mxu0 0.0
    %283 = vmatpush1.msra.mxu0 %v54
    %284 = vmatprep.subr.mxu0 0.0
    %285 = vmatpush2.msra.mxu0 0.0
    %286 = vmatprep.subr.mxu0 0.0
    %287 = vmatpush2.msra.mxu0 0.0
    %288 = vmatprep.subr.mxu0 0.0
    %289 = vmatpush2.msra.mxu0 0.0
    %290 = vmatprep.subr.mxu0 0.0
    %291 = vmatpush2.msra.mxu0 0.0
    %292 = vmatprep.subr.mxu0 0.0
    %293 = vmatpush2.msra.mxu0 0.0
    %294 = vmatprep.subr.mxu0 0.0
    %295 = vmatpush2.msra.mxu0 0.0
    %296 = vmatprep.subr.mxu0 0.0
    %297 = vmatpush2.msra.mxu0 0.0
    %298 = vmatprep.subr.mxu0 0.0
    %299 = vmatpush2.msra.mxu0 0.0
    %300 = vmatprep.subr.mxu0 0.0
    %301 = vmatpush2.msra.mxu0 0.0
    %302 = vmatprep.subr.mxu0 0.0
    %303 = vmatpush2.msra.mxu0 0.0
    %304 = vmatprep.subr.mxu0 0.0
    %305 = vmatpush2.msra.mxu0 0.0
    %306 = vmatprep.subr.mxu0 0.0
    %307 = vmatpush2.msra.mxu0 0.0
    %308 = vmatprep.subr.mxu0 0.0
    %309 = vmatpush2.msra.mxu0 0.0
    %310 = vmatprep.subr.mxu0 0.0
    %311 = vmatpush2.msra.mxu0 0.0
    %312 = vmatprep.subr.mxu0 0.0
    %313 = vmatpush2.msra.mxu0 0.0
    %314 = vmatprep.subr.mxu0 0.0
    %315 = vmatpush2.msra.mxu0 0.0
    %316 = vmatprep.mubr.f32.mxu0 0.0
    %317 = vmatmul.mubr.f32.gmra.mxu0 %v245
    %v318 = vpop.f32.mrf.mxu0
    %v319 = vadd.f32 0.0, %v318
    %v320 = vpop.f32.mrf.mxu0
    %321 = vdwg.mxu0
    %v322 = vadd.f32 %v251, %v319
    %v323 = vtanh.pop %v322
    %324 = vset.pattern.permute.xlu0 4
    %325 = vperm.xlu0 %324, %v51
    %v326 = vpop.permute.xlu0 %325
    %v328 = vmul.f32 %v326, %v79
    %v329 = vadd.f32 %v328, %v86
    %330 = vmatprep.subr.mxu0 0.0
    %331 = vmatpush1.msra.mxu0 %v69
    %332 = vmatprep.subr.mxu0 0.0
    %333 = vmatpush1.msra.mxu0 %v68
    %334 = vmatprep.subr.mxu0 0.0
    %335 = vmatpush1.msra.mxu0 %v67
    %336 = vmatprep.subr.mxu0 0.0
    %337 = vmatpush1.msra.mxu0 %v66
    %338 = vmatprep.subr.mxu0 0.0
    %339 = vmatpush1.msra.mxu0 %v65
    %340 = vmatprep.subr.mxu0 0.0
    %341 = vmatpush1.msra.mxu0 %v64
    %342 = vmatprep.subr.mxu0 0.0
    %343 = vmatpush1.msra.mxu0 %v63
    %344 = vmatprep.subr.mxu0 0.0
    %345 = vmatpush1.msra.mxu0 %v62
    %346 = vmatprep.subr.mxu0 0.0
    %347 = vmatpush1.msra.mxu0 %v61
    %348 = vmatprep.subr.mxu0 0.0
    %349 = vmatpush1.msra.mxu0 %v60
    %350 = vmatprep.subr.mxu0 0.0
    %351 = vmatpush1.msra.mxu0 %v59
    %352 = vmatprep.subr.mxu0 0.0
    %353 = vmatpush1.msra.mxu0 %v58
    %354 = vmatprep.subr.mxu0 0.0
    %355 = vmatpush1.msra.mxu0 %v57
    %356 = vmatprep.subr.mxu0 0.0
    %357 = vmatpush1.msra.mxu0 %v56
    %358 = vmatprep.subr.mxu0 0.0
    %359 = vmatpush1.msra.mxu0 %v55
    %360 = vmatprep.subr.mxu0 0.0
    %361 = vmatpush1.msra.mxu0 %v54
    %362 = vmatprep.subr.mxu0 0.0
    %363 = vmatpush2.msra.mxu0 0.0
    %364 = vmatprep.subr.mxu0 0.0
    %365 = vmatpush2.msra.mxu0 0.0
    %366 = vmatprep.subr.mxu0 0.0
    %367 = vmatpush2.msra.mxu0 0.0
    %368 = vmatprep.subr.mxu0 0.0
    %369 = vmatpush2.msra.mxu0 0.0
    %370 = vmatprep.subr.mxu0 0.0
    %371 = vmatpush2.msra.mxu0 0.0
    %372 = vmatprep.subr.mxu0 0.0
    %373 = vmatpush2.msra.mxu0 0.0
    %374 = vmatprep.subr.mxu0 0.0
    %375 = vmatpush2.msra.mxu0 0.0
    %376 = vmatprep.subr.mxu0 0.0
    %377 = vmatpush2.msra.mxu0 0.0
    %378 = vmatprep.subr.mxu0 0.0
    %379 = vmatpush2.msra.mxu0 0.0
    %380 = vmatprep.subr.mxu0 0.0
    %381 = vmatpush2.msra.mxu0 0.0
    %382 = vmatprep.subr.mxu0 0.0
    %383 = vmatpush2.msra.mxu0 0.0
    %384 = vmatprep.subr.mxu0 0.0
    %385 = vmatpush2.msra.mxu0 0.0
    %386 = vmatprep.subr.mxu0 0.0
    %387 = vmatpush2.msra.mxu0 0.0
    %388 = vmatprep.subr.mxu0 0.0
    %389 = vmatpush2.msra.mxu0 0.0
    %390 = vmatprep.subr.mxu0 0.0
    %391 = vmatpush2.msra.mxu0 0.0
    %392 = vmatprep.subr.mxu0 0.0
    %393 = vmatpush2.msra.mxu0 0.0
    %394 = vmatprep.mubr.f32.mxu0 0.0
    %395 = vmatmul.mubr.f32.gmra.mxu0 %v323
    %v396 = vpop.f32.mrf.mxu0
    %v397 = vadd.f32 0.0, %v396
    %v398 = vpop.f32.mrf.mxu0
    %399 = vdwg.mxu0
    %v400 = vadd.f32 %v329, %v397
    %v401 = vtanh.pop %v400
    %402 = vset.pattern.permute.xlu0 5
    %403 = vperm.xlu0 %402, %v51
    %v404 = vpop.permute.xlu0 %403
    %v406 = vmul.f32 %v404, %v79
    %v407 = vadd.f32 %v406, %v86
    %408 = vmatprep.subr.mxu0 0.0
    %409 = vmatpush1.msra.mxu0 %v69
    %410 = vmatprep.subr.mxu0 0.0
    %411 = vmatpush1.msra.mxu0 %v68
    %412 = vmatprep.subr.mxu0 0.0
    %413 = vmatpush1.msra.mxu0 %v67
    %414 = vmatprep.subr.mxu0 0.0
    %415 = vmatpush1.msra.mxu0 %v66
    %416 = vmatprep.subr.mxu0 0.0
    %417 = vmatpush1.msra.mxu0 %v65
    %418 = vmatprep.subr.mxu0 0.0
    %419 = vmatpush1.msra.mxu0 %v64
    %420 = vmatprep.subr.mxu0 0.0
    %421 = vmatpush1.msra.mxu0 %v63
    %422 = vmatprep.subr.mxu0 0.0
    %423 = vmatpush1.msra.mxu0 %v62
    %424 = vmatprep.subr.mxu0 0.0
    %425 = vmatpush1.msra.mxu0 %v61
    %426 = vmatprep.subr.mxu0 0.0
    %427 = vmatpush1.msra.mxu0 %v60
    %428 = vmatprep.subr.mxu0 0.0
    %429 = vmatpush1.msra.mxu0 %v59
    %430 = vmatprep.subr.mxu0 0.0
    %431 = vmatpush1.msra.mxu0 %v58
    %432 = vmatprep.subr.mxu0 0.0
    %433 = vmatpush1.msra.mxu0 %v57
    %434 = vmatprep.subr.mxu0 0.0
    %435 = vmatpush1.msra.mxu0 %v56
    %436 = vmatprep.subr.mxu0 0.0
    %437 = vmatpush1.msra.mxu0 %v55
    %438 = vmatprep.subr.mxu0 0.0
    %439 = vmatpush1.msra.mxu0 %v54
    %440 = vmatprep.subr.mxu0 0.0
    %441 = vmatpush2.msra.mxu0 0.0
    %442 = vmatprep.subr.mxu0 0.0
    %443 = vmatpush2.msra.mxu0 0.0
    %444 = vmatprep.subr.mxu0 0.0
    %445 = vmatpush2.msra.mxu0 0.0
    %446 = vmatprep.subr.mxu0 0.0
    %447 = vmatpush2.msra.mxu0 0.0
    %448 = vmatprep.subr.mxu0 0.0
    %449 = vmatpush2.msra.mxu0 0.0
    %450 = vmatprep.subr.mxu0 0.0
    %451 = vmatpush2.msra.mxu0 0.0
    %452 = vmatprep.subr.mxu0 0.0
    %453 = vmatpush2.msra.mxu0 0.0
    %454 = vmatprep.subr.mxu0 0.0
    %455 = vmatpush2.msra.mxu0 0.0
    %456 = vmatprep.subr.mxu0 0.0
    %457 = vmatpush2.msra.mxu0 0.0
    %458 = vmatprep.subr.mxu0 0.0
    %459 = vmatpush2.msra.mxu0 0.0
    %460 = vmatprep.subr.mxu0 0.0
    %461 = vmatpush2.msra.mxu0 0.0
    %462 = vmatprep.subr.mxu0 0.0
    %463 = vmatpush2.msra.mxu0 0.0
    %464 = vmatprep.subr.mxu0 0.0
    %465 = vmatpush2.msra.mxu0 0.0
    %466 = vmatprep.subr.mxu0 0.0
    %467 = vmatpush2.msra.mxu0 0.0
    %468 = vmatprep.subr.mxu0 0.0
    %469 = vmatpush2.msra.mxu0 0.0
    %470 = vmatprep.subr.mxu0 0.0
    %471 = vmatpush2.msra.mxu0 0.0
    %472 = vmatprep.mubr.f32.mxu0 0.0
    %473 = vmatmul.mubr.f32.gmra.mxu0 %v401
    %v474 = vpop.f32.mrf.mxu0
    %v475 = vadd.f32 0.0, %v474
    %v476 = vpop.f32.mrf.mxu0
    %477 = vdwg.mxu0
    %v478 = vadd.f32 %v407, %v475
    %v479 = vtanh.pop %v478
    %480 = vset.pattern.permute.xlu0 6
    %481 = vperm.xlu0 %480, %v51
    %v482 = vpop.permute.xlu0 %481
    %v484 = vmul.f32 %v482, %v79
    %v485 = vadd.f32 %v484, %v86
    %486 = vmatprep.subr.mxu0 0.0
    %487 = vmatpush1.msra.mxu0 %v69
    %488 = vmatprep.subr.mxu0 0.0
    %489 = vmatpush1.msra.mxu0 %v68
    %490 = vmatprep.subr.mxu0 0.0
    %491 = vmatpush1.msra.mxu0 %v67
    %492 = vmatprep.subr.mxu0 0.0
    %493 = vmatpush1.msra.mxu0 %v66
    %494 = vmatprep.subr.mxu0 0.0
    %495 = vmatpush1.msra.mxu0 %v65
    %496 = vmatprep.subr.mxu0 0.0
    %497 = vmatpush1.msra.mxu0 %v64
    %498 = vmatprep.subr.mxu0 0.0
    %499 = vmatpush1.msra.mxu0 %v63
    %500 = vmatprep.subr.mxu0 0.0
    %501 = vmatpush1.msra.mxu0 %v62
    %502 = vmatprep.subr.mxu0 0.0
    %503 = vmatpush1.msra.mxu0 %v61
    %504 = vmatprep.subr.mxu0 0.0
    %505 = vmatpush1.msra.mxu0 %v60
    %506 = vmatprep.subr.mxu0 0.0
    %507 = vmatpush1.msra.mxu0 %v59
    %508 = vmatprep.subr.mxu0 0.0
    %509 = vmatpush1.msra.mxu0 %v58
    %510 = vmatprep.subr.mxu0 0.0
    %511 = vmatpush1.msra.mxu0 %v57
    %512 = vmatprep.subr.mxu0 0.0
    %513 = vmatpush1.msra.mxu0 %v56
    %514 = vmatprep.subr.mxu0 0.0
    %515 = vmatpush1.msra.mxu0 %v55
    %516 = vmatprep.subr.mxu0 0.0
    %517 = vmatpush1.msra.mxu0 %v54
    %518 = vmatprep.subr.mxu0 0.0
    %519 = vmatpush2.msra.mxu0 0.0
    %520 = vmatprep.subr.mxu0 0.0
    %521 = vmatpush2.msra.mxu0 0.0
    %522 = vmatprep.subr.mxu0 0.0
    %523 = vmatpush2.msra.mxu0 0.0
    %524 = vmatprep.subr.mxu0 0.0
    %525 = vmatpush2.msra.mxu0 0.0
    %526 = vmatprep.subr.mxu0 0.0
    %527 = vmatpush2.msra.mxu0 0.0
    %528 = vmatprep.subr.mxu0 0.0
    %529 = vmatpush2.msra.mxu0 0.0
    %530 = vmatprep.subr.mxu0 0.0
    %531 = vmatpush2.msra.mxu0 0.0
    %532 = vmatprep.subr.mxu0 0.0
    %533 = vmatpush2.msra.mxu0 0.0
    %534 = vmatprep.subr.mxu0 0.0
    %535 = vmatpush2.msra.mxu0 0.0
    %536 = vmatprep.subr.mxu0 0.0
    %537 = vmatpush2.msra.mxu0 0.0
    %538 = vmatprep.subr.mxu0 0.0
    %539 = vmatpush2.msra.mxu0 0.0
    %540 = vmatprep.subr.mxu0 0.0
    %541 = vmatpush2.msra.mxu0 0.0
    %542 = vmatprep.subr.mxu0 0.0
    %543 = vmatpush2.msra.mxu0 0.0
    %544 = vmatprep.subr.mxu0 0.0
    %545 = vmatpush2.msra.mxu0 0.0
    %546 = vmatprep.subr.mxu0 0.0
    %547 = vmatpush2.msra.mxu0 0.0
    %548 = vmatprep.subr.mxu0 0.0
    %549 = vmatpush2.msra.mxu0 0.0
    %550 = vmatprep.mubr.f32.mxu0 0.0
    %551 = vmatmul.mubr.f32.gmra.mxu0 %v479
    %v552 = vpop.f32.mrf.mxu0
    %v553 = vadd.f32 0.0, %v552
    %v554 = vpop.f32.mrf.mxu0
    %555 = vdwg.mxu0
    %v556 = vadd.f32 %v485, %v553
    %v557 = vtanh.pop %v556
    %558 = vset.pattern.permute.xlu0 7
    %559 = vperm.xlu0 %558, %v51
    %v560 = vpop.permute.xlu0 %559
    %v562 = vmul.f32 %v560, %v79
    %v563 = vadd.f32 %v562, %v86
    %564 = vmatprep.subr.mxu0 0.0
    %565 = vmatpush1.msra.mxu0 %v69
    %566 = vmatprep.subr.mxu0 0.0
    %567 = vmatpush1.msra.mxu0 %v68
    %568 = vmatprep.subr.mxu0 0.0
    %569 = vmatpush1.msra.mxu0 %v67
    %570 = vmatprep.subr.mxu0 0.0
    %571 = vmatpush1.msra.mxu0 %v66
    %572 = vmatprep.subr.mxu0 0.0
    %573 = vmatpush1.msra.mxu0 %v65
    %574 = vmatprep.subr.mxu0 0.0
    %575 = vmatpush1.msra.mxu0 %v64
    %576 = vmatprep.subr.mxu0 0.0
    %577 = vmatpush1.msra.mxu0 %v63
    %578 = vmatprep.subr.mxu0 0.0
    %579 = vmatpush1.msra.mxu0 %v62
    %580 = vmatprep.subr.mxu0 0.0
    %581 = vmatpush1.msra.mxu0 %v61
    %582 = vmatprep.subr.mxu0 0.0
    %583 = vmatpush1.msra.mxu0 %v60
    %584 = vmatprep.subr.mxu0 0.0
    %585 = vmatpush1.msra.mxu0 %v59
    %586 = vmatprep.subr.mxu0 0.0
    %587 = vmatpush1.msra.mxu0 %v58
    %588 = vmatprep.subr.mxu0 0.0
    %589 = vmatpush1.msra.mxu0 %v57
    %590 = vmatprep.subr.mxu0 0.0
    %591 = vmatpush1.msra.mxu0 %v56
    %592 = vmatprep.subr.mxu0 0.0
    %593 = vmatpush1.msra.mxu0 %v55
    %594 = vmatprep.subr.mxu0 0.0
    %595 = vmatpush1.msra.mxu0 %v54
    %596 = vmatprep.subr.mxu0 0.0
    %597 = vmatpush2.msra.mxu0 0.0
    %598 = vmatprep.subr.mxu0 0.0
    %599 = vmatpush2.msra.mxu0 0.0
    %600 = vmatprep.subr.mxu0 0.0
    %601 = vmatpush2.msra.mxu0 0.0
    %602 = vmatprep.subr.mxu0 0.0
    %603 = vmatpush2.msra.mxu0 0.0
    %604 = vmatprep.subr.mxu0 0.0
    %605 = vmatpush2.msra.mxu0 0.0
    %606 = vmatprep.subr.mxu0 0.0
    %607 = vmatpush2.msra.mxu0 0.0
    %608 = vmatprep.subr.mxu0 0.0
    %609 = vmatpush2.msra.mxu0 0.0
    %610 = vmatprep.subr.mxu0 0.0
    %611 = vmatpush2.msra.mxu0 0.0
    %612 = vmatprep.subr.mxu0 0.0
    %613 = vmatpush2.msra.mxu0 0.0
    %614 = vmatprep.subr.mxu0 0.0
    %615 = vmatpush2.msra.mxu0 0.0
    %616 = vmatprep.subr.mxu0 0.0
    %617 = vmatpush2.msra.mxu0 0.0
    %618 = vmatprep.subr.mxu0 0.0
    %619 = vmatpush2.msra.mxu0 0.0
    %620 = vmatprep.subr.mxu0 0.0
    %621 = vmatpush2.msra.mxu0 0.0
    %622 = vmatprep.subr.mxu0 0.0
    %623 = vmatpush2.msra.mxu0 0.0
    %624 = vmatprep.subr.mxu0 0.0
    %625 = vmatpush2.msra.mxu0 0.0
    %626 = vmatprep.subr.mxu0 0.0
    %627 = vmatpush2.msra.mxu0 0.0
    %628 = vmatprep.mubr.f32.mxu0 0.0
    %629 = vmatmul.mubr.f32.gmra.mxu0 %v557
    %v630 = vpop.f32.mrf.mxu0
    %v631 = vadd.f32 0.0, %v630
    %v632 = vpop.f32.mrf.mxu0
    %633 = vdwg.mxu0
    %v634 = vadd.f32 %v563, %v631
    %v635 = vtanh.pop %v634
    %v636 = vld [vmem:[#allocation4] sm:$0xff]
    %v637 = vld [vmem:[#allocation4 + $0x8] sm:$0xff]
    %v638 = vld [vmem:[#allocation4 + $0x10] sm:$0xff]
    %v639 = vld [vmem:[#allocation4 + $0x18] sm:$0xff]
    %v640 = vld [vmem:[#allocation4 + $0x20] sm:$0xff]
    %v641 = vld [vmem:[#allocation4 + $0x28] sm:$0xff]
    %v642 = vld [vmem:[#allocation4 + $0x30] sm:$0xff]
    %v643 = vld [vmem:[#allocation4 + $0x38] sm:$0xff]
    %v644 = vld [vmem:[#allocation4 + $0x40] sm:$0xff]
    %v645 = vld [vmem:[#allocation4 + $0x48] sm:$0xff]
    %v646 = vld [vmem:[#allocation4 + $0x50] sm:$0xff]
    %v647 = vld [vmem:[#allocation4 + $0x58] sm:$0xff]
    %v648 = vld [vmem:[#allocation4 + $0x60] sm:$0xff]
    %v649 = vld [vmem:[#allocation4 + $0x68] sm:$0xff]
    %v650 = vld [vmem:[#allocation4 + $0x70] sm:$0xff]
    %v651 = vld [vmem:[#allocation4 + $0x78] sm:$0xff]
    %v652 = vld [vmem:[%s5] sm:$0x1]
    %v654 = vlaneseq
    %v655 = vshrl.u32 %v654, 7
    %v656 = vsub.s32 0, %v655
    %v657 = vrot.slane %v652, %v656
    %659 = vmatprep.subr.mxu0 0.0
    %660 = vmatpush1.msra.mxu0 %v651
    %661 = vmatprep.subr.mxu0 0.0
    %662 = vmatpush1.msra.mxu0 %v650
    %663 = vmatprep.subr.mxu0 0.0
    %664 = vmatpush1.msra.mxu0 %v649
    %665 = vmatprep.subr.mxu0 0.0
    %666 = vmatpush1.msra.mxu0 %v648
    %667 = vmatprep.subr.mxu0 0.0
    %668 = vmatpush1.msra.mxu0 %v647
    %669 = vmatprep.subr.mxu0 0.0
    %670 = vmatpush1.msra.mxu0 %v646
    %671 = vmatprep.subr.mxu0 0.0
    %672 = vmatpush1.msra.mxu0 %v645
    %673 = vmatprep.subr.mxu0 0.0
    %674 = vmatpush1.msra.mxu0 %v644
    %675 = vmatprep.subr.mxu0 0.0
    %676 = vmatpush1.msra.mxu0 %v643
    %677 = vmatprep.subr.mxu0 0.0
    %678 = vmatpush1.msra.mxu0 %v642
    %679 = vmatprep.subr.mxu0 0.0
    %680 = vmatpush1.msra.mxu0 %v641
    %681 = vmatprep.subr.mxu0 0.0
    %682 = vmatpush1.msra.mxu0 %v640
    %683 = vmatprep.subr.mxu0 0.0
    %684 = vmatpush1.msra.mxu0 %v639
    %685 = vmatprep.subr.mxu0 0.0
    %686 = vmatpush1.msra.mxu0 %v638
    %687 = vmatprep.subr.mxu0 0.0
    %688 = vmatpush1.msra.mxu0 %v637
    %689 = vmatprep.subr.mxu0 0.0
    %690 = vmatpush1.msra.mxu0 %v636
    %691 = vmatprep.subr.mxu0 0.0
    %692 = vmatpush2.msra.mxu0 0.0
    %693 = vmatprep.subr.mxu0 0.0
    %694 = vmatpush2.msra.mxu0 0.0
    %695 = vmatprep.subr.mxu0 0.0
    %696 = vmatpush2.msra.mxu0 0.0
    %697 = vmatprep.subr.mxu0 0.0
    %698 = vmatpush2.msra.mxu0 0.0
    %699 = vmatprep.subr.mxu0 0.0
    %700 = vmatpush2.msra.mxu0 0.0
    %701 = vmatprep.subr.mxu0 0.0
    %702 = vmatpush2.msra.mxu0 0.0
    %703 = vmatprep.subr.mxu0 0.0
    %704 = vmatpush2.msra.mxu0 0.0
    %705 = vmatprep.subr.mxu0 0.0
    %706 = vmatpush2.msra.mxu0 0.0
    %707 = vmatprep.subr.mxu0 0.0
    %708 = vmatpush2.msra.mxu0 0.0
    %709 = vmatprep.subr.mxu0 0.0
    %710 = vmatpush2.msra.mxu0 0.0
    %711 = vmatprep.subr.mxu0 0.0
    %712 = vmatpush2.msra.mxu0 0.0
    %713 = vmatprep.subr.mxu0 0.0
    %714 = vmatpush2.msra.mxu0 0.0
    %715 = vmatprep.subr.mxu0 0.0
    %716 = vmatpush2.msra.mxu0 0.0
    %717 = vmatprep.subr.mxu0 0.0
    %718 = vmatpush2.msra.mxu0 0.0
    %719 = vmatprep.subr.mxu0 0.0
    %720 = vmatpush2.msra.mxu0 0.0
    %721 = vmatprep.subr.mxu0 0.0
    %722 = vmatpush2.msra.mxu0 0.0
    %723 = vmatprep.mubr.f32.mxu0 0.0
    %724 = vmatmul.mubr.f32.gmra.mxu0 %v635
    %v725 = vpop.f32.mrf.mxu0
    %v726 = vadd.f32 %v657, %v725
    %v727 = vpop.f32.mrf.mxu0
    %728 = vdwg.mxu0
    %729 = vst [vmem:[%s6] sm:$0xff] %v726
    // Predicated region
    $region34: #{forward.1} parent=1 // pred_check
      _
    $region35: #{forward.1} parent=1 // pred_check_branch
      %731 = sbr.rel (0) target = $region37
    $region36: #{forward.1} parent=1 // pred_region
      _
    $region37: #{forward.1} parent=1 // pred_fallthru
      _
    // Predicated region
    $region38: #{forward.1} parent=1 // pred_check
      _
    $region39: #{forward.1} parent=1 // pred_check_branch
      %733 = sbr.rel (0) target = $region41
    $region40: #{forward.1} parent=1 // pred_region
      _
    $region41: #{forward.1} parent=1 // pred_fallthru
      _
    %734 = vsyncpa [#allocation3], 1
    %735 = vsyncpa [#allocation5], 1

</llo_original>
